<compile_context>
chip_gen: v7x
topology: tpu7x:2x2x1
jax: 0.10.0
libtpu: 0.0.40
codegen_flags: <defaults>
</compile_context>

<pallas_src>
import functools

import jax
import jax.numpy as jnp
from jax.experimental import pallas as pl
from jax.experimental.pallas import tpu as pltpu


_PER_BUFFER_CAP = 4 * 1024 * 1024      # max bytes for one (tile, H) f32 buffer
_RESIDENT_TABLE_CAP = 8 * 1024 * 1024  # table kept VMEM-resident below this size


def _round_up(x, m):
    return (x + m - 1) // m * m


def _layer_norm(x, gamma, beta, eps, hidden):
    """LayerNorm over the last axis; single pass stats (sum + sum of squares)."""
    inv_h = 1.0 / float(hidden)
    s1 = jnp.sum(x, axis=-1, keepdims=True)
    s2 = jnp.sum(x * x, axis=-1, keepdims=True)
    mean = s1 * inv_h
    var = s2 * inv_h - mean * mean
    return (x - mean) * jax.lax.rsqrt(var + eps) * gamma + beta


def _embed_ln_resident_kernel(ids_ref, table_ref, gamma_ref, beta_ref, out_ref,
                              *, tv, n_chunks, eps, hidden):
    # ids_ref   : (TM, 1)    int32
    # table_ref : (Vp, H)    f32   whole table, same block for every token tile (resident)
    # gamma_ref : (1, H)     f32
    # beta_ref  : (1, H)     f32
    # out_ref   : (TM, H)    f32
    ids = ids_ref[...]                                            # (TM, 1)
    tm = ids.shape[0]
    lane_iota = jax.lax.broadcasted_iota(jnp.int32, (tm, tv), 1)  # base-free iota

    if n_chunks == 1:
        onehot = (ids == lane_iota).astype(jnp.float32)           # (TM, Vp)
        out_ref[...] = jnp.dot(onehot, table_ref[...],
                               preferred_element_type=jnp.float32)
    else:
        out_ref[...] = jnp.zeros_like(out_ref)

        def chunk_body(c, carry):
            start = pl.multiple_of(c * tv, tv)
            onehot = ((ids - c * tv) == lane_iota).astype(jnp.float32)   # (TM, TV)
            out_ref[...] += jnp.dot(onehot, table_ref[pl.ds(start, tv), :],
                                    preferred_element_type=jnp.float32)
            return carry

        jax.lax.fori_loop(0, n_chunks, chunk_body, 0)

    out_ref[...] = _layer_norm(out_ref[...], gamma_ref[...], beta_ref[...], eps, hidden)


def _embed_ln_stream_kernel(ids_ref, table_ref, gamma_ref, beta_ref, out_ref,
                            *, tv, eps, hidden):
    # Fallback for tables too large to keep VMEM-resident: the table is streamed
    # through VMEM in (tv, H) blocks along a vocab reduction grid axis, and the
    # partial one-hot matmuls accumulate directly into the resident out_ref block.
    j = pl.program_id(1)

    @pl.when(j == 0)
    def _():
        out_ref[...] = jnp.zeros_like(out_ref)

    ids = ids_ref[...]                                            # (TM, 1)
    tm = ids.shape[0]
    lane_iota = jax.lax.broadcasted_iota(jnp.int32, (tm, tv), 1)
    onehot = ((ids - j * tv) == lane_iota).astype(jnp.float32)    # (TM, TV)
    out_ref[...] += jnp.dot(onehot, table_ref[...],
                            preferred_element_type=jnp.float32)

    @pl.when(j == pl.num_programs(1) - 1)
    def _():
        out_ref[...] = _layer_norm(out_ref[...], gamma_ref[...], beta_ref[...],
                                   eps, hidden)


def make_simple_embeddings(table, gamma, beta, *, eps=1e-12, tm=512, tv=512,
                           force_path=None):
    """Prepare parameters once (cast/pad hoisted out of the forward path) and
    return forward(input_ids) -> (B, S, H) float32."""
    V, H = table.shape
    row_bytes = 4 * H

    # Cap each (tile, H) f32 buffer at ~4 MiB so double-buffering stays inside every
    # generation's scoped-VMEM budget (v5e 16 MiB default, v7x 64 MiB physical).
    tile_cap = max(8, (_PER_BUFFER_CAP // row_bytes) // 8 * 8)
    tm = max(8, min(tm, tile_cap) // 8 * 8)
    tv = max(8, min(tv, tile_cap, _round_up(V, 8)) // 8 * 8)

    v_pad = _round_up(V, tv)
    table_f32 = jnp.asarray(table, jnp.float32)
    if v_pad != V:
        # Zero padding rows: never matched (in-range ids < V), so gather is unaffected.
        table_f32 = jnp.pad(table_f32, ((0, v_pad - V), (0, 0)))
    gamma2 = jnp.asarray(gamma, jnp.float32).reshape(1, H)
    beta2 = jnp.asarray(beta, jnp.float32).reshape(1, H)

    table_bytes = v_pad * row_bytes
    resident = table_bytes <= _RESIDENT_TABLE_CAP
    if force_path == "resident":
        resident = True
    elif force_path == "stream":
        resident = False
    n_chunks = v_pad // tv

    def forward(input_ids):
        B, S = input_ids.shape
        N = B * S
        tm_eff = max(8, min(tm, _round_up(N, 8)))
        n_pad = _round_up(N, tm_eff)
        # Megacore (v7x has 2 TensorCores): prefer >= 2 token tiles when there is work.
        if n_pad // tm_eff < 2 and N > 8:
            tm_eff = max(8, _round_up((N + 1) // 2, 8))
            n_pad = _round_up(N, tm_eff)

        ids_flat = input_ids.reshape(N).astype(jnp.int32)
        if n_pad != N:
            ids_flat = jnp.pad(ids_flat, (0, n_pad - N))   # pad -> id 0 rows, sliced off
        ids_flat = ids_flat.reshape(n_pad, 1)

        out_bytes = 2 * tm_eff * row_bytes                  # double-buffered output block
        if resident:
            kernel = functools.partial(_embed_ln_resident_kernel, tv=tv,
                                       n_chunks=n_chunks, eps=float(eps), hidden=H)
            grid = (n_pad // tm_eff,)
            in_specs = [
                pl.BlockSpec((tm_eff, 1), lambda i: (i, 0)),     # token ids tile
                pl.BlockSpec((v_pad, H), lambda i: (0, 0)),      # whole table, DMA'd once
                pl.BlockSpec((1, H), lambda i: (0, 0)),          # gamma
                pl.BlockSpec((1, H), lambda i: (0, 0)),          # beta
            ]
            out_specs = pl.BlockSpec((tm_eff, H), lambda i: (i, 0))
            semantics = ("parallel",)
            est = 2 * table_bytes + out_bytes + 4 * tm_eff * 4 + 4 * row_bytes
        else:
            kernel = functools.partial(_embed_ln_stream_kernel, tv=tv,
                                       eps=float(eps), hidden=H)
            grid = (n_pad // tm_eff, n_chunks)
            in_specs = [
                pl.BlockSpec((tm_eff, 1), lambda i, j: (i, 0)),  # ids tile (reused over j)
                pl.BlockSpec((tv, H), lambda i, j: (j, 0)),      # streamed table tile
                pl.BlockSpec((1, H), lambda i, j: (0, 0)),       # gamma
                pl.BlockSpec((1, H), lambda i, j: (0, 0)),       # beta
            ]
            out_specs = pl.BlockSpec((tm_eff, H), lambda i, j: (i, 0))  # resident over j
            semantics = ("parallel", "arbitrary")
            est = 2 * tv * row_bytes + out_bytes + 4 * tm_eff * 4 + 4 * row_bytes

        # Explicit scoped-VMEM limit with headroom; capped at 48 MiB so it is valid on
        # v7x's 64 MiB physical VMEM as well as v5e/v6e.
        vmem_limit = int(min(48 * 2**20, max(32 * 2**20, 2 * est)))

        out_flat = pl.pallas_call(
            kernel,
            out_shape=jax.ShapeDtypeStruct((n_pad, H), jnp.float32),
            grid_spec=pltpu.PrefetchScalarGridSpec(
                num_scalar_prefetch=0,
                grid=grid,
                in_specs=in_specs,
                out_specs=out_specs,
            ),
            compiler_params=pltpu.CompilerParams(
                dimension_semantics=semantics,
                vmem_limit_bytes=vmem_limit),
        )(ids_flat, table_f32, gamma2, beta2)

        return out_flat[:N].reshape(B, S, H)

    return forward


def _reference(input_ids, table, gamma, beta, eps):
    emb = table[input_ids]
    mu = emb.mean(-1, keepdims=True)
    var = ((emb - mu) ** 2).mean(-1, keepdims=True)
    return (emb - mu) / jnp.sqrt(var + eps) * gamma + beta


if __name__ == "__main__":
    # Synthetic config: vocab=128, hidden=32, pad_token_id=0, eps=1e-12, dropout eval (identity).
    VOCAB, HIDDEN, PAD_ID, EPS = 128, 32, 0, 1e-12
    B, S = 2, 8

    key = jax.random.PRNGKey(0)
    k_tab, k_ids, k_tab2, k_g2, k_b2, k_ids2 = jax.random.split(key, 6)

    # PyTorch-style init: N(0, 1) embedding table (padding_idx row zeroed), gamma=1, beta=0.
    table = jax.random.normal(k_tab, (VOCAB, HIDDEN), dtype=jnp.float32)
    table = table.at[PAD_ID].set(0.0)
    gamma = jnp.ones((HIDDEN,), dtype=jnp.float32)
    beta = jnp.zeros((HIDDEN,), dtype=jnp.float32)
    input_ids = jax.random.randint(k_ids, (B, S), 0, VOCAB, dtype=jnp.int32)

    fwd = make_simple_embeddings(table, gamma, beta, eps=EPS)
    out = jax.block_until_ready(fwd(input_ids))
    ref = _reference(input_ids, table, gamma, beta, EPS)
    assert out.shape == (B, S, HIDDEN)
    assert jnp.allclose(out, ref, atol=1e-5, rtol=1e-5)

    # Larger shape: exercises the in-kernel multi-chunk vocab loop, multiple token tiles,
    # and the vocab/token padding paths on the resident-table path.
    V2, H2, B2, S2 = 1200, 64, 3, 100
    table2 = jax.random.normal(k_tab2, (V2, H2), dtype=jnp.float32).at[0].set(0.0)
    gamma2 = 0.5 + jax.random.uniform(k_g2, (H2,), dtype=jnp.float32)
    beta2 = jax.random.normal(k_b2, (H2,), dtype=jnp.float32) * 0.1
    ids2 = jax.random.randint(k_ids2, (B2, S2), 0, V2, dtype=jnp.int32)
    ref2 = _reference(ids2, table2, gamma2, beta2, EPS)

    fwd2 = make_simple_embeddings(table2, gamma2, beta2, eps=EPS)
    out2 = jax.block_until_ready(fwd2(ids2))
    assert out2.shape == (B2, S2, H2)
    assert jnp.allclose(out2, ref2, atol=1e-5, rtol=1e-5)

    # Force the large-vocab streaming fallback to verify that path also runs clean.
    fwd3 = make_simple_embeddings(table2, gamma2, beta2, eps=EPS, force_path="stream")
    out3 = jax.block_until_ready(fwd3(ids2))
    assert jnp.allclose(out3, ref2, atol=1e-5, rtol=1e-5)

    print("KERNEL_OK")
</pallas_src>

<mosaic_0001>
module attributes {stable_mosaic.version = 11 : i64} {
  func.func @_embed_ln_resident_kernel(%arg0: i32, %arg1: memref<8x1xi32, #tpu.memory_space<vmem>>, %arg2: memref<128x32xf32, #tpu.memory_space<vmem>>, %arg3: memref<1x32xf32, #tpu.memory_space<vmem>>, %arg4: memref<1x32xf32, #tpu.memory_space<vmem>>, %arg5: memref<8x32xf32, #tpu.memory_space<vmem>>) attributes {dimension_semantics = [#tpu.dimension_semantics<parallel>], iteration_bounds = array<i64: 2>, scalar_prefetch = 0 : i64, scratch_operands = 0 : i64, tpu.core_type = #tpu.core_type<tc>, window_params = [{transform_indices = @transform_0, window_bounds = array<i64: 8, 1>}, {pipeline_mode = #tpu.pipeline_mode<synchronous>, transform_indices = @transform_1, window_bounds = array<i64: 128, 32>}, {pipeline_mode = #tpu.pipeline_mode<synchronous>, transform_indices = @transform_2, window_bounds = array<i64: 1, 32>}, {pipeline_mode = #tpu.pipeline_mode<synchronous>, transform_indices = @transform_3, window_bounds = array<i64: 1, 32>}, {transform_indices = @transform_4, window_bounds = array<i64: 8, 32>}]} {
    %c0 = arith.constant 0 : index
    %c0_0 = arith.constant 0 : index
    %0 = vector.load %arg1[%c0, %c0_0] : memref<8x1xi32, #tpu.memory_space<vmem>>, vector<8x1xi32>
    %1 = tpu.iota {dimensions = array<i32: 1>} : vector<8x128xi32>
    %2 = vector.broadcast %0 : vector<8x1xi32> to vector<8x128xi32>
    %3 = arith.cmpi eq, %2, %1 : vector<8x128xi32>
    %4 = arith.extui %3 : vector<8x128xi1> to vector<8x128xi32>
    %5 = arith.sitofp %4 : vector<8x128xi32> to vector<8x128xf32>
    %c0_1 = arith.constant 0 : index
    %c0_2 = arith.constant 0 : index
    %6 = vector.load %arg2[%c0_1, %c0_2] : memref<128x32xf32, #tpu.memory_space<vmem>>, vector<128x32xf32>
    %cst = arith.constant dense<0.000000e+00> : vector<8x32xf32>
    %7 = tpu.matmul %5, %6, %cst {dimension_numbers = #tpu.dot_dimension_numbers<[1], [0], [0], [1], [0, 0, 1, 1], [], []>} : vector<8x128xf32>, vector<128x32xf32>, vector<8x32xf32> -> vector<8x32xf32>
    %c0_3 = arith.constant 0 : index
    %c0_4 = arith.constant 0 : index
    %8 = vector.load %arg5[%c0_3, %c0_4] : memref<8x32xf32, #tpu.memory_space<vmem>>, vector<8x32xf32>
    tpu.vector_store %arg5[%c0_3, %c0_4], %7 {strides = array<i32>} : memref<8x32xf32, #tpu.memory_space<vmem>>, vector<8x32xf32>,
    %c0_5 = arith.constant 0 : index
    %c0_6 = arith.constant 0 : index
    %9 = vector.load %arg5[%c0_5, %c0_6] : memref<8x32xf32, #tpu.memory_space<vmem>>, vector<8x32xf32>
    %c0_7 = arith.constant 0 : index
    %c0_8 = arith.constant 0 : index
    %10 = vector.load %arg3[%c0_7, %c0_8] : memref<1x32xf32, #tpu.memory_space<vmem>>, vector<1x32xf32>
    %c0_9 = arith.constant 0 : index
    %c0_10 = arith.constant 0 : index
    %11 = vector.load %arg4[%c0_9, %c0_10] : memref<1x32xf32, #tpu.memory_space<vmem>>, vector<1x32xf32>
    %cst_11 = arith.constant dense<0.000000e+00> : vector<8xf32>
    %12 = vector.multi_reduction <add>, %9, %cst_11 [1] : vector<8x32xf32> to vector<8xf32>
    %13 = vector.shape_cast %12 : vector<8xf32> to vector<8x1xf32>
    %14 = arith.mulf %9, %9 : vector<8x32xf32>
    %cst_12 = arith.constant dense<0.000000e+00> : vector<8xf32>
    %15 = vector.multi_reduction <add>, %14, %cst_12 [1] : vector<8x32xf32> to vector<8xf32>
    %16 = vector.shape_cast %15 : vector<8xf32> to vector<8x1xf32>
    %cst_13 = arith.constant 3.125000e-02 : f32
    %17 = vector.broadcast %cst_13 : f32 to vector<8x1xf32>
    %18 = arith.mulf %13, %17 : vector<8x1xf32>
    %cst_14 = arith.constant 3.125000e-02 : f32
    %19 = vector.broadcast %cst_14 : f32 to vector<8x1xf32>
    %20 = arith.mulf %16, %19 : vector<8x1xf32>
    %21 = arith.mulf %18, %18 : vector<8x1xf32>
    %22 = arith.subf %20, %21 : vector<8x1xf32>
    %23 = vector.broadcast %18 : vector<8x1xf32> to vector<8x32xf32>
    %24 = arith.subf %9, %23 : vector<8x32xf32>
    %cst_15 = arith.constant 9.99999996E-13 : f32
    %25 = vector.broadcast %cst_15 : f32 to vector<8x1xf32>
    %26 = arith.addf %22, %25 : vector<8x1xf32>
    %27 = math.rsqrt %26 : vector<8x1xf32>
    %28 = vector.broadcast %27 : vector<8x1xf32> to vector<8x32xf32>
    %29 = arith.mulf %24, %28 : vector<8x32xf32>
    %30 = vector.broadcast %10 : vector<1x32xf32> to vector<8x32xf32>
    %31 = arith.mulf %29, %30 : vector<8x32xf32>
    %32 = vector.broadcast %11 : vector<1x32xf32> to vector<8x32xf32>
    %33 = arith.addf %31, %32 : vector<8x32xf32>
    %c0_16 = arith.constant 0 : index
    %c0_17 = arith.constant 0 : index
    %34 = vector.load %arg5[%c0_16, %c0_17] : memref<8x32xf32, #tpu.memory_space<vmem>>, vector<8x32xf32>
    tpu.vector_store %arg5[%c0_16, %c0_17], %33 {strides = array<i32>} : memref<8x32xf32, #tpu.memory_space<vmem>>, vector<8x32xf32>,
    return
  }
  func.func @transform_0(%arg0: i32) -> (i32, i32) {
    %c0_i32 = arith.constant 0 : i32
    %c0_i32_0 = arith.constant 0 : i32
    return %arg0, %c0_i32 : i32, i32
  }
  func.func @transform_1(%arg0: i32) -> (i32, i32) {
    %c0_i32 = arith.constant 0 : i32
    %c0_i32_0 = arith.constant 0 : i32
    %c0_i32_1 = arith.constant 0 : i32
    return %c0_i32, %c0_i32_0 : i32, i32
  }
  func.func @transform_2(%arg0: i32) -> (i32, i32) {
    %c0_i32 = arith.constant 0 : i32
    %c0_i32_0 = arith.constant 0 : i32
    %c0_i32_1 = arith.constant 0 : i32
    return %c0_i32, %c0_i32_0 : i32, i32
  }
  func.func @transform_3(%arg0: i32) -> (i32, i32) {
    %c0_i32 = arith.constant 0 : i32
    %c0_i32_0 = arith.constant 0 : i32
    %c0_i32_1 = arith.constant 0 : i32
    return %c0_i32, %c0_i32_0 : i32, i32
  }
  func.func @transform_4(%arg0: i32) -> (i32, i32) {
    %c0_i32 = arith.constant 0 : i32
    %c0_i32_0 = arith.constant 0 : i32
    return %arg0, %c0_i32 : i32, i32
  }
}

</mosaic_0001>

<llo_original>
// kernel: tpu_custom_call.1
$region0: #{tpu_custom_call.1}
  #allocation0 [shape = 'u32[]', space=smem, size = 0x4, offset = 0x4, fixed_abs, tag = 'smem constant byte address 0x4 - core index']
  #allocation1 [shape = 'u32[144,128]{1,0:T(1,128)}', space=vmem, size = 0x12000, scoped, tag = 'internal scratch']
  %s0 = inlined_call_operand.vmem [shape: s32[16,1], index: 0, kind: input, shape index: {}]
  %s1 = inlined_call_operand.vmem [shape: f32[128,32], index: 1, kind: input, shape index: {}]
  %s2 = inlined_call_operand.vmem [shape: f32[1,32], index: 2, kind: input, shape index: {}]
  %s3 = inlined_call_operand.vmem [shape: f32[1,32], index: 3, kind: input, shape index: {}]
  %s4 = inlined_call_operand.hbm [shape: f32[16,32], index: 4, kind: output, shape index: {}]
  %s5 = sld [smem:[#allocation0]]
  $region49: #{tpu_custom_call.1} parent=0
    _
  %s7 = ssub.s32 1, %s5
  %s8 = scalar_select 0, %s7, %s5
  $region1: #{tpu_custom_call.1} parent=0
    #allocation2 [shape = 'u8[8192]{0}', space=vmem, size = 0x2000, scoped, tag = 'output window, operand 0']
    #allocation3 [shape = 's32[2]{0}', space=sflag, size = 0x8, scoped, tag = 'scoped memory for tpu_custom_call.1']
    %9 = vsyncpa [#allocation3], 0
    %s10 = scalar_lea.sflag [#allocation3], 1
    %11 = vsyncpa %s10, 0
    loop: start=0, step=1, limit=4
    $region2: #{tpu_custom_call.1} parent=1 // loop_pre_header
      _
    $region3: #{tpu_custom_call.1} parent=1 // loop_header
      %s13 = sphi 0, %s17
      %p14 = scmp.ge.s32.totalorder %s13, 4
      %s23 = sphi 0, %s25
      %s26 = sphi 0, %s23
      %s27 = sphi 0, %s26
      %s43 = sphi 0, %s27
      %s47 = sphi 0, %s47
      %s49 = sphi 0, %s47
      %s50 = sphi 0, %s49
      %s64 = sphi 0, %s50
      %s68 = sphi 0, %s68
      %s70 = sphi 0, %s68
      %s71 = sphi 0, %s70
      %s85 = sphi 0, %s71
      %s89 = sphi 0, %s89
      %s91 = sphi 0, %s89
      %s92 = sphi 0, %s91
      %s106 = sphi 0, %s92
      %s112 = sphi 0, %s114
      %s115 = sphi 0, %s112
      %s116 = sphi 0, %s115
      %s132 = sphi 0, %s116
    $region4: #{tpu_custom_call.1} parent=1 // loop_header_branch
      %16 = sbr.rel (%p14) target = $region8
    $region5: #{tpu_custom_call.1} parent=1 // loop_body
      %s18 = ssub.s32 %s13, 1
      %s19 = ssub.s32 %s13, 2
      %s20 = sadd.s32 %s13, 1
      %s21 = ssub.s32 %s13, %s20
      %p22 = scmp.eq.s32.totalorder %s21, 0
      %s24 = sadd.s32 %s23, 1
      %s25 = scalar_select %p22, %s23, %s24
      %p28 = pneg %p22
      %p29 = scmp.eq.s32.totalorder %s13, 1
      %p30 = por %p28, %p29
      %p31 = scmp.ne.s32.totalorder %s23, %s26
      %p32 = scmp.eq.s32.totalorder %s13, 0
      %p33 = por %p31, %p32
      %p34 = scmp.ne.s32.totalorder %s23, %s26
      %p35 = scmp.eq.s32.totalorder %s18, 1
      %p36 = por %p34, %p35
      %p37 = scmp.ne.s32.totalorder %s26, %s27
      %p38 = scmp.eq.s32.totalorder %s18, 0
      %p39 = por %p37, %p38
      %p40 = scmp.ne.s32.totalorder %s26, %s27
      %p41 = scmp.eq.s32.totalorder %s19, 1
      %p42 = por %p40, %p41
      %p44 = scmp.ne.s32.totalorder %s27, %s43
      %p45 = scmp.eq.s32.totalorder %s19, 0
      %p46 = por %p44, %p45
      %s48 = sadd.s32 %s47, 1
      %p51 = scmp.eq.s32.totalorder %s13, 1
      %p52 = scmp.ne.s32.totalorder %s47, %s49
      %p53 = scmp.eq.s32.totalorder %s13, 0
      %p54 = por %p52, %p53
      %p55 = scmp.ne.s32.totalorder %s47, %s49
      %p56 = scmp.eq.s32.totalorder %s18, 1
      %p57 = por %p55, %p56
      %p58 = scmp.ne.s32.totalorder %s49, %s50
      %p59 = scmp.eq.s32.totalorder %s18, 0
      %p60 = por %p58, %p59
      %p61 = scmp.ne.s32.totalorder %s49, %s50
      %p62 = scmp.eq.s32.totalorder %s19, 1
      %p63 = por %p61, %p62
      %p65 = scmp.ne.s32.totalorder %s50, %s64
      %p66 = scmp.eq.s32.totalorder %s19, 0
      %p67 = por %p65, %p66
      %s69 = sadd.s32 %s68, 1
      %p72 = scmp.eq.s32.totalorder %s13, 1
      %p73 = scmp.ne.s32.totalorder %s68, %s70
      %p74 = scmp.eq.s32.totalorder %s13, 0
      %p75 = por %p73, %p74
      %p76 = scmp.ne.s32.totalorder %s68, %s70
      %p77 = scmp.eq.s32.totalorder %s18, 1
      %p78 = por %p76, %p77
      %p79 = scmp.ne.s32.totalorder %s70, %s71
      %p80 = scmp.eq.s32.totalorder %s18, 0
      %p81 = por %p79, %p80
      %p82 = scmp.ne.s32.totalorder %s70, %s71
      %p83 = scmp.eq.s32.totalorder %s19, 1
      %p84 = por %p82, %p83
      %p86 = scmp.ne.s32.totalorder %s71, %s85
      %p87 = scmp.eq.s32.totalorder %s19, 0
      %p88 = por %p86, %p87
      %s90 = sadd.s32 %s89, 1
      %p93 = scmp.eq.s32.totalorder %s13, 1
      %p94 = scmp.ne.s32.totalorder %s89, %s91
      %p95 = scmp.eq.s32.totalorder %s13, 0
      %p96 = por %p94, %p95
      %p97 = scmp.ne.s32.totalorder %s89, %s91
      %p98 = scmp.eq.s32.totalorder %s18, 1
      %p99 = por %p97, %p98
      %p100 = scmp.ne.s32.totalorder %s91, %s92
      %p101 = scmp.eq.s32.totalorder %s18, 0
      %p102 = por %p100, %p101
      %p103 = scmp.ne.s32.totalorder %s91, %s92
      %p104 = scmp.eq.s32.totalorder %s19, 1
      %p105 = por %p103, %p104
      %p107 = scmp.ne.s32.totalorder %s92, %s106
      %p108 = scmp.eq.s32.totalorder %s19, 0
      %p109 = por %p107, %p108
      %s110 = ssub.s32 %s13, %s20
      %p111 = scmp.eq.s32.totalorder %s110, 0
      %s113 = sadd.s32 %s112, 1
      %s114 = scalar_select %p111, %s112, %s113
      %p117 = pneg %p111
      %p118 = scmp.eq.s32.totalorder %s13, 1
      %p119 = por %p117, %p118
      %p120 = scmp.ne.s32.totalorder %s112, %s115
      %p121 = scmp.eq.s32.totalorder %s13, 0
      %p122 = por %p120, %p121
      %p123 = scmp.ne.s32.totalorder %s112, %s115
      %p124 = scmp.eq.s32.totalorder %s18, 1
      %p125 = por %p123, %p124
      %p126 = scmp.ne.s32.totalorder %s115, %s116
      %p127 = scmp.eq.s32.totalorder %s18, 0
      %p128 = por %p126, %p127
      %p129 = scmp.ne.s32.totalorder %s115, %s116
      %p130 = scmp.eq.s32.totalorder %s19, 1
      %p131 = por %p129, %p130
      %p133 = scmp.ne.s32.totalorder %s116, %s132
      %p134 = scmp.eq.s32.totalorder %s19, 0
      %p135 = por %p133, %p134
      %p136 = scmp.le.s32.totalorder 1, %s13
      %p137 = scmp.lt.s32.totalorder %s13, 3
      %p138 = pnand %p136, %p137
      %p139 = pneg %p138
      // Predicated region
      $region9: #{tpu_custom_call.1} parent=5 // pred_check
        _
      $region10: #{tpu_custom_call.1} parent=5 // pred_check_branch
        %141 = sbr.rel (%p138) target = $region12
      $region11: #{tpu_custom_call.1} parent=5 // pred_region
        %s142 = ssub.s32 %s13, 1
        // Predicated region
        $region13: #{tpu_custom_call.1} parent=11 // pred_check
          %p143 = pneg %p60
        $region14: #{tpu_custom_call.1} parent=11 // pred_check_branch
          %145 = sbr.rel (%p143) target = $region16
        $region15: #{tpu_custom_call.1} parent=11 // pred_region
          _
        $region16: #{tpu_custom_call.1} parent=11 // pred_fallthru
          _
        // Predicated region
        $region17: #{tpu_custom_call.1} parent=11 // pred_check
          %p146 = pneg %p81
        $region18: #{tpu_custom_call.1} parent=11 // pred_check_branch
          %148 = sbr.rel (%p146) target = $region20
        $region19: #{tpu_custom_call.1} parent=11 // pred_region
          _
        $region20: #{tpu_custom_call.1} parent=11 // pred_fallthru
          _
        // Predicated region
        $region21: #{tpu_custom_call.1} parent=11 // pred_check
          %p149 = pneg %p102
        $region22: #{tpu_custom_call.1} parent=11 // pred_check_branch
          %151 = sbr.rel (%p149) target = $region24
        $region23: #{tpu_custom_call.1} parent=11 // pred_region
          _
        $region24: #{tpu_custom_call.1} parent=11 // pred_fallthru
          _
      $region12: #{tpu_custom_call.1} parent=5 // pred_fallthru
        _
      %p152 = scmp.lt.s32.totalorder %s13, 2
      // Predicated region
      $region25: #{tpu_custom_call.1} parent=5 // pred_check
        %p153 = pneg %p152
      $region26: #{tpu_custom_call.1} parent=5 // pred_check_branch
        %155 = sbr.rel (%p153) target = $region28
      $region27: #{tpu_custom_call.1} parent=5 // pred_region
        // Predicated region
        $region29: #{tpu_custom_call.1} parent=27 // pred_check
          %p156 = pneg %p33
        $region30: #{tpu_custom_call.1} parent=27 // pred_check_branch
          %158 = sbr.rel (%p156) target = $region32
        $region31: #{tpu_custom_call.1} parent=27 // pred_region
          %p159 = scmp.lt.s32.totalorder %s13, 1
          %s160 = scalar_select %p159, %s13, 1
          %s161 = smul.addr %s160, 8
          %s162 = scalar_lea.vmem %s0, %s161
        $region32: #{tpu_custom_call.1} parent=27 // pred_fallthru
          _
      $region28: #{tpu_custom_call.1} parent=5 // pred_fallthru
        _
      %p163 = scmp.le.s32.totalorder 1, %s13
      %p164 = scmp.lt.s32.totalorder %s13, 3
      %p165 = pnand %p163, %p164
      %p166 = pneg %p165
      // Predicated region
      $region33: #{tpu_custom_call.1} parent=5 // pred_check
        _
      $region34: #{tpu_custom_call.1} parent=5 // pred_check_branch
        %168 = sbr.rel (%p165) target = $region36
      $region35: #{tpu_custom_call.1} parent=5 // pred_region
        %s169 = ssub.s32 %s13, 1
        %p170 = scmp.lt.s32.totalorder %s18, 1
        %s171 = scalar_select %p170, %s18, 1
        %s172 = smul.addr %s171, 8
        %s173 = scalar_lea.vmem %s0, %s172
        %p174 = pneg %p39
        %p175 = pneg %p36
        %p176 = pneg %p60
        %p177 = pneg %p57
        %p178 = pneg %p81
        %p179 = pneg %p78
        %p180 = pneg %p102
        %p181 = pneg %p99
        %p182 = pneg %p128
        %p183 = pneg %p125
        %s184 = sand.u32 %s115, 1
        %s185 = scalar_lea.sflag [#allocation3], %s184
        %s186 = sand.u32 %s115, 1
        %s187 = smul.addr %s186, 8
        %s188 = scalar_lea.vmem [#allocation2], %s187
        %p189 = scmp.lt.s32.totalorder %s18, 1
        %s190 = scalar_select %p189, %s18, 1
        %s191 = smul.addr %s190, 8
        %s192 = scalar_lea.vmem %s0, %s191
        %v193 = vld [vmem:[%s192] sm:$0xff]
        %v194 = vlaneseq
        %v195 = vand.u32 %v194, 127
        %196 = vset.pattern.permute.xlu0 0
        %197 = vperm.xlu0 %196, %v193
        %v198 = vpop.permute.xlu0 %197
        %vm199 = vcmp.eq.s32.totalorder %v198, %v195
        %v200 = vsel %vm199, 1, 0
        %v201 = vcvt.s32.f32 %v200
        %v202 = vld [vmem:[%s1] sm:$0xff]
        %v203 = vld [vmem:[%s1 + $0x8] sm:$0xff]
        %v204 = vld [vmem:[%s1 + $0x10] sm:$0xff]
        %v205 = vld [vmem:[%s1 + $0x18] sm:$0xff]
        %v206 = vld [vmem:[%s1 + $0x20] sm:$0xff]
        %v207 = vld [vmem:[%s1 + $0x28] sm:$0xff]
        %v208 = vld [vmem:[%s1 + $0x30] sm:$0xff]
        %v209 = vld [vmem:[%s1 + $0x38] sm:$0xff]
        %v210 = vld [vmem:[%s1 + $0x40] sm:$0xff]
        %v211 = vld [vmem:[%s1 + $0x48] sm:$0xff]
        %v212 = vld [vmem:[%s1 + $0x50] sm:$0xff]
        %v213 = vld [vmem:[%s1 + $0x58] sm:$0xff]
        %v214 = vld [vmem:[%s1 + $0x60] sm:$0xff]
        %v215 = vld [vmem:[%s1 + $0x68] sm:$0xff]
        %v216 = vld [vmem:[%s1 + $0x70] sm:$0xff]
        %v217 = vld [vmem:[%s1 + $0x78] sm:$0xff]
        %218 = vmatprep.subr.mxu0 0.0
        %219 = vmatpush1.msra.mxu0 %v202
        %220 = vmatprep.subr.mxu0 0.0
        %221 = vmatpush1.msra.mxu0 %v203
        %222 = vmatprep.subr.mxu0 0.0
        %223 = vmatpush1.msra.mxu0 %v204
        %224 = vmatprep.subr.mxu0 0.0
        %225 = vmatpush1.msra.mxu0 %v205
        %226 = vmatprep.subr.mxu0 0.0
        %227 = vmatpush1.msra.mxu0 %v206
        %228 = vmatprep.subr.mxu0 0.0
        %229 = vmatpush1.msra.mxu0 %v207
        %230 = vmatprep.subr.mxu0 0.0
        %231 = vmatpush1.msra.mxu0 %v208
        %232 = vmatprep.subr.mxu0 0.0
        %233 = vmatpush1.msra.mxu0 %v209
        %234 = vmatprep.subr.mxu0 0.0
        %235 = vmatpush1.msra.mxu0 %v210
        %236 = vmatprep.subr.mxu0 0.0
        %237 = vmatpush1.msra.mxu0 %v211
        %238 = vmatprep.subr.mxu0 0.0
        %239 = vmatpush1.msra.mxu0 %v212
        %240 = vmatprep.subr.mxu0 0.0
        %241 = vmatpush1.msra.mxu0 %v213
        %242 = vmatprep.subr.mxu0 0.0
        %243 = vmatpush1.msra.mxu0 %v214
        %244 = vmatprep.subr.mxu0 0.0
        %245 = vmatpush1.msra.mxu0 %v215
        %246 = vmatprep.subr.mxu0 0.0
        %247 = vmatpush1.msra.mxu0 %v216
        %248 = vmatprep.subr.mxu0 0.0
        %249 = vmatpush1.msra.mxu0 %v217
        %250 = vmatprep.subr.mxu0 0.0
        %251 = vmatpush1.msra.mxu0 0.0
        %252 = vmatprep.subr.mxu0 0.0
        %253 = vmatpush1.msra.mxu0 0.0
        %254 = vmatprep.subr.mxu0 0.0
        %255 = vmatpush1.msra.mxu0 0.0
        %256 = vmatprep.subr.mxu0 0.0
        %257 = vmatpush1.msra.mxu0 0.0
        %258 = vmatprep.subr.mxu0 0.0
        %259 = vmatpush1.msra.mxu0 0.0
        %260 = vmatprep.subr.mxu0 0.0
        %261 = vmatpush1.msra.mxu0 0.0
        %262 = vmatprep.subr.mxu0 0.0
        %263 = vmatpush1.msra.mxu0 0.0
        %264 = vmatprep.subr.mxu0 0.0
        %265 = vmatpush1.msra.mxu0 0.0
        %266 = vmatprep.subr.mxu0 0.0
        %267 = vmatpush1.msra.mxu0 0.0
        %268 = vmatprep.subr.mxu0 0.0
        %269 = vmatpush1.msra.mxu0 0.0
        %270 = vmatprep.subr.mxu0 0.0
        %271 = vmatpush1.msra.mxu0 0.0
        %272 = vmatprep.subr.mxu0 0.0
        %273 = vmatpush1.msra.mxu0 0.0
        %274 = vmatprep.subr.mxu0 0.0
        %275 = vmatpush1.msra.mxu0 0.0
        %276 = vmatprep.subr.mxu0 0.0
        %277 = vmatpush1.msra.mxu0 0.0
        %278 = vmatprep.subr.mxu0 0.0
        %279 = vmatpush1.msra.mxu0 0.0
        %280 = vmatprep.subr.mxu0 0.0
        %281 = vmatpush1.msra.mxu0 0.0
        %282 = vmatprep.mubr.f32.mxu0 0.0
        %283 = vmatmul.mubr.f32.gmra.mrb[0].mxu0 %v201
        %v284 = vpop.f32.mrb[0].mxu0
        %v285 = vadd.f32 0.0, %v284
        %v286 = vpop.f32.mrb[0].mxu0
        %287 = vdwg.mxu0
        %vm288 = vcmask 261120
        %289 = vst.msk [vmem:[%s188] sm:$0xff] %vm288, %v285
        %v290 = vld [vmem:[%s188] sm:$0xff]
        %v291 = vld [vmem:[%s2] sm:$0x1]
        %v292 = vld [vmem:[%s3] sm:$0x1]
        %v293 = vsel %vm288, %v290, 0.0
        %294 = vadd.xlane.f32.xlu0 %v293
        %v295 = vpop.xlane.xlu0 %294
        %v296 = vmul.f32 %v290, %v290
        %v297 = vsel %vm288, %v296, 0.0
        %298 = vadd.xlane.f32.xlu0 %v297
        %v299 = vpop.xlane.xlu0 %298
        %v300 = vmul.f32 %v295, 0.03125
        %v301 = vmul.f32 %v299, 0.03125
        %v302 = vmul.f32 %v300, %v300
        %v303 = vsub.f32 %v301, %v302
        %v304 = vsub.f32 %v290, %v300
        %v305 = vadd.f32 %v303, 1e-12
        %v306 = vrsqrt.pop %v305
        %v307 = vmul.f32 %v304, %v306
        %v309 = vlaneseq
        %v310 = vshrl.u32 %v309, 7
        %v311 = vsub.s32 0, %v310
        %v312 = vrot.slane %v291, %v311
        %v314 = vmul.f32 %v307, %v312
        %v316 = vlaneseq
        %v317 = vshrl.u32 %v316, 7
        %v318 = vsub.s32 0, %v317
        %v319 = vrot.slane %v292, %v318
        %v321 = vadd.f32 %v314, %v319
        %322 = vst.msk [vmem:[%s188] sm:$0xff] %vm288, %v321
        %s323 = sand.u32 %s115, 1
        %s324 = scalar_lea.sflag [#allocation3], %s323
        %s325 = sand.u32 %s115, 1
        %s326 = smul.addr %s325, 8
        %s327 = scalar_lea.vmem [#allocation2], %s326
        // Predicated region
        $region37: #{tpu_custom_call.1} parent=35 // pred_check
          %p328 = pneg %p125
        $region38: #{tpu_custom_call.1} parent=35 // pred_check_branch
          %330 = sbr.rel (%p328) target = $region40
        $region39: #{tpu_custom_call.1} parent=35 // pred_region
          %s332 = ssub.s32 128, 128
          %333 = vsyncadd %s324, %s332
          %s334 = smul.addr %s18, 128
          %s335 = scalar_lea.hbm %s4, %s334
          %s337 = sshll.u32 %s327, 4
          %s338 = int_to_ptr.vmem [resolvable:$true] %s337
          %340 = dma.vmem_to_hbm [thread:$0]  %s338, 128, %s335, %s324
        $region40: #{tpu_custom_call.1} parent=35 // pred_fallthru
          _
      $region36: #{tpu_custom_call.1} parent=5 // pred_fallthru
        _
      %p341 = scmp.le.s32.totalorder 2, %s13
      // Predicated region
      $region41: #{tpu_custom_call.1} parent=5 // pred_check
        %p342 = pneg %p341
      $region42: #{tpu_custom_call.1} parent=5 // pred_check_branch
        %344 = sbr.rel (%p342) target = $region44
      $region43: #{tpu_custom_call.1} parent=5 // pred_region
        %s345 = ssub.s32 %s13, 2
        // Predicated region
        $region45: #{tpu_custom_call.1} parent=43 // pred_check
          %p346 = pneg %p131
        $region46: #{tpu_custom_call.1} parent=43 // pred_check_branch
          %348 = sbr.rel (%p346) target = $region48
        $region47: #{tpu_custom_call.1} parent=43 // pred_region
          %s349 = sand.u32 %s116, 1
          %s350 = scalar_lea.sflag [#allocation3], %s349
          %s351 = sand.u32 %s116, 1
          %s352 = smul.addr %s351, 8
          %s353 = scalar_lea.vmem [#allocation2], %s352
          %354 = dma.done %s350, 128
        $region48: #{tpu_custom_call.1} parent=43 // pred_fallthru
          _
      $region44: #{tpu_custom_call.1} parent=5 // pred_fallthru
        _
    $region6: #{tpu_custom_call.1} parent=1 // loop_footer
      %s17 = sadd.s32 1, %s13
    $region7: #{tpu_custom_call.1} parent=1 // loop_footer_branch
      %12 = sbr.rel target = $region3
    $region8: #{tpu_custom_call.1} parent=1 // loop_exit
      _
    %355 = vsyncpa [#allocation3], 1
    %s356 = scalar_lea.sflag [#allocation3], 1
    %357 = vsyncpa %s356, 1

</llo_original>
